<compile_context>
chip_gen: v5e
topology: v5e:2x2
jax: 0.10.0
libtpu: 0.0.40
codegen_flags: <defaults>
</compile_context>

<pallas_src>
import jax
import jax.numpy as jnp
from jax.experimental import pallas as pl
from jax.experimental.pallas import tpu as pltpu


# ----------------------------------------------------------------------------
# Pallas kernel: unrolled LSTMCell recurrence + batched output projection
# ----------------------------------------------------------------------------
def _decoder_kernel(gates_in_ref,  # (T, Bp, 4H)  precomputed ctx/x/bias gate terms
                    whh_ref,       # (H, 4H)      hidden->gates weight (transposed)
                    wha_ref,       # (H, Ap)      hidden_to_action weight (T, padded)
                    bha_ref,       # (1, Ap)      hidden_to_action bias (padded)
                    out_ref):      # (T*Bp, Ap)   logits, time-major, padded
    T, B, G = gates_in_ref.shape
    H = whh_ref.shape[0]

    whh = whh_ref[...]

    # Activation-select mask, hoisted out of the time loop: gate order in
    # PyTorch LSTMCell is [i, f, g, o]; only the g chunk uses tanh.
    lane = jax.lax.broadcasted_iota(jnp.int32, (B, G), 1)
    g_mask = (lane >= 2 * H) & (lane < 3 * H)

    h = jnp.zeros((B, H), jnp.float32)
    c = jnp.zeros((B, H), jnp.float32)
    hs = []
    # Static unroll: T is small and known at trace time; only the recurrent
    # h @ W_hh.T matmul remains per step.
    for t in range(T):
        gates = gates_in_ref[t] + jnp.dot(h, whh,
                                          preferred_element_type=jnp.float32)
        acts = jnp.where(g_mask, jnp.tanh(gates), jax.nn.sigmoid(gates))
        i_g = acts[:, 0 * H:1 * H]
        f_g = acts[:, 1 * H:2 * H]
        g_g = acts[:, 2 * H:3 * H]
        o_g = acts[:, 3 * H:4 * H]
        c = f_g * c + i_g * g_g
        h = o_g * jnp.tanh(c)
        hs.append(h)

    # Batched hidden_to_action projection + single lane-dense output store.
    h_all = jnp.concatenate(hs, axis=0)                       # (T*Bp, H)
    out_ref[...] = (jnp.dot(h_all, wha_ref[...],
                            preferred_element_type=jnp.float32)
                    + bha_ref[...])


# ----------------------------------------------------------------------------
# Wrapper
# ----------------------------------------------------------------------------
def attention_action_decoder_forward(ins, his, actions,
                                     current_env_context, ini_env_context,
                                     params):
    """Teacher-forced forward pass. Returns (batch, act_len, action_size)."""
    emb_w = params["embedding"]          # (action_size, E), row 0 == 0 (padding_idx)
    W_ih = params["W_ih"]                # (4H, input_size)
    W_hh = params["W_hh"]                # (4H, H)
    b_ih = params["b_ih"]                # (4H,)
    b_hh = params["b_hh"]                # (4H,)
    W_ha = params["W_ha"]                # (A, H)
    b_ha = params["b_ha"]                # (A,)

    B, T = actions.shape
    E = emb_w.shape[1]
    H = W_hh.shape[1]
    A = W_ha.shape[0]
    G = 4 * H

    Bp = ((B + 7) // 8) * 8              # pad batch to sublane width (8)
    Ap = ((A + 127) // 128) * 128        # pad action dim to lane width (128)

    # ---- glue (plain JAX): all loop-invariant, teacher-forced work ----
    X = jnp.take(emb_w, actions, axis=0)                       # (B, T, E)
    # LSTM input per step: cat([ins, current_env, his, ini_env, x_t], -1)
    ctx = jnp.concatenate(
        [ins, current_env_context, his, ini_env_context], axis=-1)  # (B, Cd)
    Cd = ctx.shape[1]

    # gates_in[t, b] = [ctx_b, x_tb] @ W_ih.T + b_ih + b_hh
    ctx_gates = ctx @ W_ih[:, :Cd].T + (b_ih + b_hh)           # (B, G)
    x_gates = jnp.einsum('bte,ge->btg', X, W_ih[:, Cd:])       # (B, T, G)
    gates_in = jnp.transpose(x_gates, (1, 0, 2)) + ctx_gates[None]   # (T, B, G)
    gates_in = jnp.pad(gates_in.astype(jnp.float32),
                       ((0, 0), (0, Bp - B), (0, 0)))          # (T, Bp, G)

    whh = W_hh.T.astype(jnp.float32)                                  # (H, G)
    wha = jnp.pad(W_ha.T, ((0, 0), (0, Ap - A))).astype(jnp.float32)  # (H, Ap)
    bha = jnp.pad(b_ha, (0, Ap - A)).astype(jnp.float32)[None, :]     # (1, Ap)

    grid_spec = pltpu.PrefetchScalarGridSpec(
        num_scalar_prefetch=0,
        grid=(1,),
        in_specs=[
            pl.BlockSpec((T, Bp, G), lambda i: (0, 0, 0)),   # gates_in
            pl.BlockSpec((H, G), lambda i: (0, 0)),          # whh
            pl.BlockSpec((H, Ap), lambda i: (0, 0)),         # wha
            pl.BlockSpec((1, Ap), lambda i: (0, 0)),         # bha
        ],
        out_specs=pl.BlockSpec((T * Bp, Ap), lambda i: (0, 0)),
    )

    out_flat = pl.pallas_call(
        _decoder_kernel,
        out_shape=jax.ShapeDtypeStruct((T * Bp, Ap), jnp.float32),
        grid_spec=grid_spec,
        compiler_params=pltpu.CompilerParams(
            dimension_semantics=("arbitrary",)),   # sequential recurrence
    )(gates_in, whh, wha, bha)

    # Crop pads and restore the PyTorch output layout (B, T, A).  The cropped
    # transpose touches only B*T*A elements (tiny), the heavy store above is
    # already lane-dense.
    out = out_flat.reshape(T, Bp, Ap)[:, :B, :A]               # (T, B, A)
    return jnp.transpose(out, (1, 0, 2))                       # (B, T, A)


# ----------------------------------------------------------------------------
# Pure-JAX reference (for correctness check)
# ----------------------------------------------------------------------------
def reference_forward(ins, his, actions, cur_env, ini_env, params):
    emb_w, W_ih, W_hh = params["embedding"], params["W_ih"], params["W_hh"]
    b_ih, b_hh, W_ha, b_ha = (params["b_ih"], params["b_hh"],
                              params["W_ha"], params["b_ha"])
    B, T = actions.shape
    H = W_hh.shape[1]
    X = jnp.take(emb_w, actions, axis=0)
    ctx = jnp.concatenate([ins, cur_env, his, ini_env], axis=-1)
    h = jnp.zeros((B, H), jnp.float32)
    c = jnp.zeros((B, H), jnp.float32)
    outs = []
    for t in range(T):
        inp = jnp.concatenate([ctx, X[:, t]], axis=-1)
        gates = inp @ W_ih.T + b_ih + h @ W_hh.T + b_hh
        i_g = jax.nn.sigmoid(gates[:, 0 * H:1 * H])
        f_g = jax.nn.sigmoid(gates[:, 1 * H:2 * H])
        g_g = jnp.tanh(gates[:, 2 * H:3 * H])
        o_g = jax.nn.sigmoid(gates[:, 3 * H:4 * H])
        c = f_g * c + i_g * g_g
        h = o_g * jnp.tanh(c)
        outs.append(h)
    out = jnp.stack(outs, axis=0) @ W_ha.T + b_ha   # (T, B, A)
    return jnp.transpose(out, (1, 0, 2))


# ----------------------------------------------------------------------------
# Deterministic parameter init (matching the module's __init__ shapes)
# ----------------------------------------------------------------------------
def init_params(key, action_size, ins_hidden_size, hidden_size,
                embedding_size, env_dim):
    input_size = 2 * env_dim + 4 * ins_hidden_size + embedding_size
    k = jax.random.split(key, 8)

    def xavier(key, shape):
        fan_out, fan_in = shape
        bound = (6.0 / (fan_in + fan_out)) ** 0.5
        return jax.random.uniform(key, shape, jnp.float32, -bound, bound)

    def uni(key, shape, bound):
        return jax.random.uniform(key, shape, jnp.float32, -bound, bound)

    lstm_bound = 1.0 / (hidden_size ** 0.5)
    emb = jax.random.normal(k[0], (action_size, embedding_size), jnp.float32)
    emb = emb.at[0].set(0.0)   # padding_idx=0
    return {
        "embedding": emb,
        "W_ih": uni(k[1], (4 * hidden_size, input_size), lstm_bound),
        "W_hh": uni(k[2], (4 * hidden_size, hidden_size), lstm_bound),
        "b_ih": uni(k[3], (4 * hidden_size,), lstm_bound),
        "b_hh": uni(k[4], (4 * hidden_size,), lstm_bound),
        "W_ha": xavier(k[5], (action_size, hidden_size)),   # xavier_uniform_
        "b_ha": uni(k[6], (action_size,), 1.0 / (hidden_size ** 0.5)),
    }


if __name__ == "__main__":
    # small shapes consistent with the module
    action_size = 12
    ins_hidden_size = 8
    hidden_size = 32
    embedding_size = 16
    env_dim = 8
    batch = 4
    act_len = 6

    key = jax.random.PRNGKey(0)
    kp, k1, k2, k3, k4, k5 = jax.random.split(key, 6)

    params = init_params(kp, action_size, ins_hidden_size, hidden_size,
                         embedding_size, env_dim)

    ins = jax.random.normal(k1, (batch, 2 * ins_hidden_size), jnp.float32)
    his = jax.random.normal(k2, (batch, 2 * ins_hidden_size), jnp.float32)
    cur_env = jax.random.normal(k3, (batch, env_dim), jnp.float32)
    ini_env = jax.random.normal(k4, (batch, env_dim), jnp.float32)
    actions = jax.random.randint(k5, (batch, act_len), 0, action_size,
                                 dtype=jnp.int32)

    out = attention_action_decoder_forward(ins, his, actions, cur_env,
                                           ini_env, params)
    out = jax.block_until_ready(out)

    ref = reference_forward(ins, his, actions, cur_env, ini_env, params)
    ref = jax.block_until_ready(ref)

    assert out.shape == (batch, act_len, action_size), out.shape
    assert jnp.allclose(out, ref, atol=1e-5, rtol=1e-5), (
        float(jnp.max(jnp.abs(out - ref))))

    print("KERNEL_OK")
</pallas_src>

<mosaic_0001>
module attributes {stable_mosaic.version = 11 : i64} {
  func.func @_decoder_kernel(%arg0: i32, %arg1: memref<6x8x128xf32, #tpu.memory_space<vmem>>, %arg2: memref<32x128xf32, #tpu.memory_space<vmem>>, %arg3: memref<32x128xf32, #tpu.memory_space<vmem>>, %arg4: memref<1x128xf32, #tpu.memory_space<vmem>>, %arg5: memref<48x128xf32, #tpu.memory_space<vmem>>) attributes {dimension_semantics = [#tpu.dimension_semantics<arbitrary>], iteration_bounds = array<i64: 1>, scalar_prefetch = 0 : i64, scratch_operands = 0 : i64, tpu.core_type = #tpu.core_type<tc>, window_params = [{pipeline_mode = #tpu.pipeline_mode<synchronous>, transform_indices = @transform_0, window_bounds = array<i64: 6, 8, 128>}, {pipeline_mode = #tpu.pipeline_mode<synchronous>, transform_indices = @transform_1, window_bounds = array<i64: 32, 128>}, {pipeline_mode = #tpu.pipeline_mode<synchronous>, transform_indices = @transform_2, window_bounds = array<i64: 32, 128>}, {pipeline_mode = #tpu.pipeline_mode<synchronous>, transform_indices = @transform_3, window_bounds = array<i64: 1, 128>}, {pipeline_mode = #tpu.pipeline_mode<synchronous>, transform_indices = @transform_4, window_bounds = array<i64: 48, 128>}]} {
    %c0 = arith.constant 0 : index
    %c0_0 = arith.constant 0 : index
    %0 = vector.load %arg2[%c0, %c0_0] : memref<32x128xf32, #tpu.memory_space<vmem>>, vector<32x128xf32>
    %1 = tpu.iota {dimensions = array<i32: 1>} : vector<8x128xi32>
    %c64_i32 = arith.constant 64 : i32
    %2 = vector.broadcast %c64_i32 : i32 to vector<8x128xi32>
    %3 = arith.cmpi sge, %1, %2 : vector<8x128xi32>
    %c96_i32 = arith.constant 96 : i32
    %4 = vector.broadcast %c96_i32 : i32 to vector<8x128xi32>
    %5 = arith.cmpi slt, %1, %4 : vector<8x128xi32>
    %6 = arith.andi %3, %5 : vector<8x128xi1>
    %cst = arith.constant 0.000000e+00 : f32
    %7 = vector.broadcast %cst : f32 to vector<8x32xf32>
    %cst_1 = arith.constant 0.000000e+00 : f32
    %8 = vector.broadcast %cst_1 : f32 to vector<8x32xf32>
    %c0_2 = arith.constant 0 : index
    %c0_3 = arith.constant 0 : index
    %c0_4 = arith.constant 0 : index
    %9 = vector.load %arg1[%c0_2, %c0_3, %c0_4] : memref<6x8x128xf32, #tpu.memory_space<vmem>>, vector<1x8x128xf32>
    %10 = vector.shape_cast %9 : vector<1x8x128xf32> to vector<8x128xf32>
    %cst_5 = arith.constant dense<0.000000e+00> : vector<8x128xf32>
    %11 = tpu.matmul %7, %0, %cst_5 {dimension_numbers = #tpu.dot_dimension_numbers<[1], [0], [0], [1], [0, 0, 1, 1], [], []>} : vector<8x32xf32>, vector<32x128xf32>, vector<8x128xf32> -> vector<8x128xf32>
    %12 = arith.addf %10, %11 : vector<8x128xf32>
    %13 = math.tanh %12 : vector<8x128xf32>
    %14 = arith.negf %12 : vector<8x128xf32>
    %15 = math.exp %14 : vector<8x128xf32>
    %cst_6 = arith.constant 1.000000e+00 : f32
    %16 = vector.broadcast %cst_6 : f32 to vector<8x128xf32>
    %17 = arith.addf %16, %15 : vector<8x128xf32>
    %18 = arith.divf %16, %17 : vector<8x128xf32>
    %19 = arith.select %6, %13, %18 : vector<8x128xi1>, vector<8x128xf32>
    %20 = vector.extract_strided_slice %19 {offsets = [0, 0], sizes = [8, 32], strides = [1, 1]} : vector<8x128xf32> to vector<8x32xf32>
    %21 = vector.extract_strided_slice %19 {offsets = [0, 32], sizes = [8, 32], strides = [1, 1]} : vector<8x128xf32> to vector<8x32xf32>
    %22 = vector.extract_strided_slice %19 {offsets = [0, 64], sizes = [8, 32], strides = [1, 1]} : vector<8x128xf32> to vector<8x32xf32>
    %23 = vector.extract_strided_slice %19 {offsets = [0, 96], sizes = [8, 32], strides = [1, 1]} : vector<8x128xf32> to vector<8x32xf32>
    %24 = arith.mulf %21, %8 : vector<8x32xf32>
    %25 = arith.mulf %20, %22 : vector<8x32xf32>
    %26 = arith.addf %24, %25 : vector<8x32xf32>
    %27 = math.tanh %26 : vector<8x32xf32>
    %28 = arith.mulf %23, %27 : vector<8x32xf32>
    %c1 = arith.constant 1 : index
    %c0_7 = arith.constant 0 : index
    %c0_8 = arith.constant 0 : index
    %29 = vector.load %arg1[%c1, %c0_7, %c0_8] : memref<6x8x128xf32, #tpu.memory_space<vmem>>, vector<1x8x128xf32>
    %30 = vector.shape_cast %29 : vector<1x8x128xf32> to vector<8x128xf32>
    %cst_9 = arith.constant dense<0.000000e+00> : vector<8x128xf32>
    %31 = tpu.matmul %28, %0, %cst_9 {dimension_numbers = #tpu.dot_dimension_numbers<[1], [0], [0], [1], [0, 0, 1, 1], [], []>} : vector<8x32xf32>, vector<32x128xf32>, vector<8x128xf32> -> vector<8x128xf32>
    %32 = arith.addf %30, %31 : vector<8x128xf32>
    %33 = math.tanh %32 : vector<8x128xf32>
    %34 = arith.negf %32 : vector<8x128xf32>
    %35 = math.exp %34 : vector<8x128xf32>
    %cst_10 = arith.constant 1.000000e+00 : f32
    %36 = vector.broadcast %cst_10 : f32 to vector<8x128xf32>
    %37 = arith.addf %36, %35 : vector<8x128xf32>
    %38 = arith.divf %36, %37 : vector<8x128xf32>
    %39 = arith.select %6, %33, %38 : vector<8x128xi1>, vector<8x128xf32>
    %40 = vector.extract_strided_slice %39 {offsets = [0, 0], sizes = [8, 32], strides = [1, 1]} : vector<8x128xf32> to vector<8x32xf32>
    %41 = vector.extract_strided_slice %39 {offsets = [0, 32], sizes = [8, 32], strides = [1, 1]} : vector<8x128xf32> to vector<8x32xf32>
    %42 = vector.extract_strided_slice %39 {offsets = [0, 64], sizes = [8, 32], strides = [1, 1]} : vector<8x128xf32> to vector<8x32xf32>
    %43 = vector.extract_strided_slice %39 {offsets = [0, 96], sizes = [8, 32], strides = [1, 1]} : vector<8x128xf32> to vector<8x32xf32>
    %44 = arith.mulf %41, %26 : vector<8x32xf32>
    %45 = arith.mulf %40, %42 : vector<8x32xf32>
    %46 = arith.addf %44, %45 : vector<8x32xf32>
    %47 = math.tanh %46 : vector<8x32xf32>
    %48 = arith.mulf %43, %47 : vector<8x32xf32>
    %c2 = arith.constant 2 : index
    %c0_11 = arith.constant 0 : index
    %c0_12 = arith.constant 0 : index
    %49 = vector.load %arg1[%c2, %c0_11, %c0_12] : memref<6x8x128xf32, #tpu.memory_space<vmem>>, vector<1x8x128xf32>
    %50 = vector.shape_cast %49 : vector<1x8x128xf32> to vector<8x128xf32>
    %cst_13 = arith.constant dense<0.000000e+00> : vector<8x128xf32>
    %51 = tpu.matmul %48, %0, %cst_13 {dimension_numbers = #tpu.dot_dimension_numbers<[1], [0], [0], [1], [0, 0, 1, 1], [], []>} : vector<8x32xf32>, vector<32x128xf32>, vector<8x128xf32> -> vector<8x128xf32>
    %52 = arith.addf %50, %51 : vector<8x128xf32>
    %53 = math.tanh %52 : vector<8x128xf32>
    %54 = arith.negf %52 : vector<8x128xf32>
    %55 = math.exp %54 : vector<8x128xf32>
    %cst_14 = arith.constant 1.000000e+00 : f32
    %56 = vector.broadcast %cst_14 : f32 to vector<8x128xf32>
    %57 = arith.addf %56, %55 : vector<8x128xf32>
    %58 = arith.divf %56, %57 : vector<8x128xf32>
    %59 = arith.select %6, %53, %58 : vector<8x128xi1>, vector<8x128xf32>
    %60 = vector.extract_strided_slice %59 {offsets = [0, 0], sizes = [8, 32], strides = [1, 1]} : vector<8x128xf32> to vector<8x32xf32>
    %61 = vector.extract_strided_slice %59 {offsets = [0, 32], sizes = [8, 32], strides = [1, 1]} : vector<8x128xf32> to vector<8x32xf32>
    %62 = vector.extract_strided_slice %59 {offsets = [0, 64], sizes = [8, 32], strides = [1, 1]} : vector<8x128xf32> to vector<8x32xf32>
    %63 = vector.extract_strided_slice %59 {offsets = [0, 96], sizes = [8, 32], strides = [1, 1]} : vector<8x128xf32> to vector<8x32xf32>
    %64 = arith.mulf %61, %46 : vector<8x32xf32>
    %65 = arith.mulf %60, %62 : vector<8x32xf32>
    %66 = arith.addf %64, %65 : vector<8x32xf32>
    %67 = math.tanh %66 : vector<8x32xf32>
    %68 = arith.mulf %63, %67 : vector<8x32xf32>
    %c3 = arith.constant 3 : index
    %c0_15 = arith.constant 0 : index
    %c0_16 = arith.constant 0 : index
    %69 = vector.load %arg1[%c3, %c0_15, %c0_16] : memref<6x8x128xf32, #tpu.memory_space<vmem>>, vector<1x8x128xf32>
    %70 = vector.shape_cast %69 : vector<1x8x128xf32> to vector<8x128xf32>
    %cst_17 = arith.constant dense<0.000000e+00> : vector<8x128xf32>
    %71 = tpu.matmul %68, %0, %cst_17 {dimension_numbers = #tpu.dot_dimension_numbers<[1], [0], [0], [1], [0, 0, 1, 1], [], []>} : vector<8x32xf32>, vector<32x128xf32>, vector<8x128xf32> -> vector<8x128xf32>
    %72 = arith.addf %70, %71 : vector<8x128xf32>
    %73 = math.tanh %72 : vector<8x128xf32>
    %74 = arith.negf %72 : vector<8x128xf32>
    %75 = math.exp %74 : vector<8x128xf32>
    %cst_18 = arith.constant 1.000000e+00 : f32
    %76 = vector.broadcast %cst_18 : f32 to vector<8x128xf32>
    %77 = arith.addf %76, %75 : vector<8x128xf32>
    %78 = arith.divf %76, %77 : vector<8x128xf32>
    %79 = arith.select %6, %73, %78 : vector<8x128xi1>, vector<8x128xf32>
    %80 = vector.extract_strided_slice %79 {offsets = [0, 0], sizes = [8, 32], strides = [1, 1]} : vector<8x128xf32> to vector<8x32xf32>
    %81 = vector.extract_strided_slice %79 {offsets = [0, 32], sizes = [8, 32], strides = [1, 1]} : vector<8x128xf32> to vector<8x32xf32>
    %82 = vector.extract_strided_slice %79 {offsets = [0, 64], sizes = [8, 32], strides = [1, 1]} : vector<8x128xf32> to vector<8x32xf32>
    %83 = vector.extract_strided_slice %79 {offsets = [0, 96], sizes = [8, 32], strides = [1, 1]} : vector<8x128xf32> to vector<8x32xf32>
    %84 = arith.mulf %81, %66 : vector<8x32xf32>
    %85 = arith.mulf %80, %82 : vector<8x32xf32>
    %86 = arith.addf %84, %85 : vector<8x32xf32>
    %87 = math.tanh %86 : vector<8x32xf32>
    %88 = arith.mulf %83, %87 : vector<8x32xf32>
    %c4 = arith.constant 4 : index
    %c0_19 = arith.constant 0 : index
    %c0_20 = arith.constant 0 : index
    %89 = vector.load %arg1[%c4, %c0_19, %c0_20] : memref<6x8x128xf32, #tpu.memory_space<vmem>>, vector<1x8x128xf32>
    %90 = vector.shape_cast %89 : vector<1x8x128xf32> to vector<8x128xf32>
    %cst_21 = arith.constant dense<0.000000e+00> : vector<8x128xf32>
    %91 = tpu.matmul %88, %0, %cst_21 {dimension_numbers = #tpu.dot_dimension_numbers<[1], [0], [0], [1], [0, 0, 1, 1], [], []>} : vector<8x32xf32>, vector<32x128xf32>, vector<8x128xf32> -> vector<8x128xf32>
    %92 = arith.addf %90, %91 : vector<8x128xf32>
    %93 = math.tanh %92 : vector<8x128xf32>
    %94 = arith.negf %92 : vector<8x128xf32>
    %95 = math.exp %94 : vector<8x128xf32>
    %cst_22 = arith.constant 1.000000e+00 : f32
    %96 = vector.broadcast %cst_22 : f32 to vector<8x128xf32>
    %97 = arith.addf %96, %95 : vector<8x128xf32>
    %98 = arith.divf %96, %97 : vector<8x128xf32>
    %99 = arith.select %6, %93, %98 : vector<8x128xi1>, vector<8x128xf32>
    %100 = vector.extract_strided_slice %99 {offsets = [0, 0], sizes = [8, 32], strides = [1, 1]} : vector<8x128xf32> to vector<8x32xf32>
    %101 = vector.extract_strided_slice %99 {offsets = [0, 32], sizes = [8, 32], strides = [1, 1]} : vector<8x128xf32> to vector<8x32xf32>
    %102 = vector.extract_strided_slice %99 {offsets = [0, 64], sizes = [8, 32], strides = [1, 1]} : vector<8x128xf32> to vector<8x32xf32>
    %103 = vector.extract_strided_slice %99 {offsets = [0, 96], sizes = [8, 32], strides = [1, 1]} : vector<8x128xf32> to vector<8x32xf32>
    %104 = arith.mulf %101, %86 : vector<8x32xf32>
    %105 = arith.mulf %100, %102 : vector<8x32xf32>
    %106 = arith.addf %104, %105 : vector<8x32xf32>
    %107 = math.tanh %106 : vector<8x32xf32>
    %108 = arith.mulf %103, %107 : vector<8x32xf32>
    %c5 = arith.constant 5 : index
    %c0_23 = arith.constant 0 : index
    %c0_24 = arith.constant 0 : index
    %109 = vector.load %arg1[%c5, %c0_23, %c0_24] : memref<6x8x128xf32, #tpu.memory_space<vmem>>, vector<1x8x128xf32>
    %110 = vector.shape_cast %109 : vector<1x8x128xf32> to vector<8x128xf32>
    %cst_25 = arith.constant dense<0.000000e+00> : vector<8x128xf32>
    %111 = tpu.matmul %108, %0, %cst_25 {dimension_numbers = #tpu.dot_dimension_numbers<[1], [0], [0], [1], [0, 0, 1, 1], [], []>} : vector<8x32xf32>, vector<32x128xf32>, vector<8x128xf32> -> vector<8x128xf32>
    %112 = arith.addf %110, %111 : vector<8x128xf32>
    %113 = math.tanh %112 : vector<8x128xf32>
    %114 = arith.negf %112 : vector<8x128xf32>
    %115 = math.exp %114 : vector<8x128xf32>
    %cst_26 = arith.constant 1.000000e+00 : f32
    %116 = vector.broadcast %cst_26 : f32 to vector<8x128xf32>
    %117 = arith.addf %116, %115 : vector<8x128xf32>
    %118 = arith.divf %116, %117 : vector<8x128xf32>
    %119 = arith.select %6, %113, %118 : vector<8x128xi1>, vector<8x128xf32>
    %120 = vector.extract_strided_slice %119 {offsets = [0, 0], sizes = [8, 32], strides = [1, 1]} : vector<8x128xf32> to vector<8x32xf32>
    %121 = vector.extract_strided_slice %119 {offsets = [0, 32], sizes = [8, 32], strides = [1, 1]} : vector<8x128xf32> to vector<8x32xf32>
    %122 = vector.extract_strided_slice %119 {offsets = [0, 64], sizes = [8, 32], strides = [1, 1]} : vector<8x128xf32> to vector<8x32xf32>
    %123 = vector.extract_strided_slice %119 {offsets = [0, 96], sizes = [8, 32], strides = [1, 1]} : vector<8x128xf32> to vector<8x32xf32>
    %124 = arith.mulf %121, %106 : vector<8x32xf32>
    %125 = arith.mulf %120, %122 : vector<8x32xf32>
    %126 = arith.addf %124, %125 : vector<8x32xf32>
    %127 = math.tanh %126 : vector<8x32xf32>
    %128 = arith.mulf %123, %127 : vector<8x32xf32>
    %129 = tpu.concatenate %28, %48, %68, %88, %108, %128 in 0 : vector<8x32xf32>, vector<8x32xf32>, vector<8x32xf32>, vector<8x32xf32>, vector<8x32xf32>, vector<8x32xf32> -> vector<48x32xf32>
    %c0_27 = arith.constant 0 : index
    %c0_28 = arith.constant 0 : index
    %130 = vector.load %arg3[%c0_27, %c0_28] : memref<32x128xf32, #tpu.memory_space<vmem>>, vector<32x128xf32>
    %cst_29 = arith.constant dense<0.000000e+00> : vector<48x128xf32>
    %131 = tpu.matmul %129, %130, %cst_29 {dimension_numbers = #tpu.dot_dimension_numbers<[1], [0], [0], [1], [0, 0, 1, 1], [], []>} : vector<48x32xf32>, vector<32x128xf32>, vector<48x128xf32> -> vector<48x128xf32>
    %c0_30 = arith.constant 0 : index
    %c0_31 = arith.constant 0 : index
    %132 = vector.load %arg4[%c0_30, %c0_31] : memref<1x128xf32, #tpu.memory_space<vmem>>, vector<1x128xf32>
    %133 = vector.broadcast %132 : vector<1x128xf32> to vector<48x128xf32>
    %134 = arith.addf %131, %133 : vector<48x128xf32>
    %c0_32 = arith.constant 0 : index
    %c0_33 = arith.constant 0 : index
    %135 = vector.load %arg5[%c0_32, %c0_33] : memref<48x128xf32, #tpu.memory_space<vmem>>, vector<48x128xf32>
    tpu.vector_store %arg5[%c0_32, %c0_33], %134 {strides = array<i32>} : memref<48x128xf32, #tpu.memory_space<vmem>>, vector<48x128xf32>,
    return
  }
  func.func @transform_0(%arg0: i32) -> (i32, i32, i32) {
    %c0_i32 = arith.constant 0 : i32
    %c0_i32_0 = arith.constant 0 : i32
    %c0_i32_1 = arith.constant 0 : i32
    %c0_i32_2 = arith.constant 0 : i32
    return %c0_i32, %c0_i32_0, %c0_i32_1 : i32, i32, i32
  }
  func.func @transform_1(%arg0: i32) -> (i32, i32) {
    %c0_i32 = arith.constant 0 : i32
    %c0_i32_0 = arith.constant 0 : i32
    %c0_i32_1 = arith.constant 0 : i32
    return %c0_i32, %c0_i32_0 : i32, i32
  }
  func.func @transform_2(%arg0: i32) -> (i32, i32) {
    %c0_i32 = arith.constant 0 : i32
    %c0_i32_0 = arith.constant 0 : i32
    %c0_i32_1 = arith.constant 0 : i32
    return %c0_i32, %c0_i32_0 : i32, i32
  }
  func.func @transform_3(%arg0: i32) -> (i32, i32) {
    %c0_i32 = arith.constant 0 : i32
    %c0_i32_0 = arith.constant 0 : i32
    %c0_i32_1 = arith.constant 0 : i32
    return %c0_i32, %c0_i32_0 : i32, i32
  }
  func.func @transform_4(%arg0: i32) -> (i32, i32) {
    %c0_i32 = arith.constant 0 : i32
    %c0_i32_0 = arith.constant 0 : i32
    %c0_i32_1 = arith.constant 0 : i32
    return %c0_i32, %c0_i32_0 : i32, i32
  }
}

</mosaic_0001>

<llo_original>
// kernel: tpu_custom_call.1
$region0: #{tpu_custom_call.1}
  #allocation0 [shape = 'u32[]', space=smem, size = 0x4, offset = 0x4, fixed_abs, tag = 'smem constant byte address 0x4 - core index']
  #allocation1 [shape = 'u32[72,128]{1,0:T(1,128)}', space=vmem, size = 0x9000, scoped, tag = 'internal scratch']
  %s0 = inlined_call_operand.hbm [shape: f32[6,8,128], index: 0, kind: input, shape index: {}]
  %s1 = inlined_call_operand.hbm [shape: f32[32,128], index: 1, kind: input, shape index: {}]
  %s2 = inlined_call_operand.hbm [shape: f32[32,128], index: 2, kind: input, shape index: {}]
  %s3 = inlined_call_operand.vmem [shape: f32[1,128], index: 3, kind: input, shape index: {}]
  %s4 = inlined_call_operand.hbm [shape: f32[48,128], index: 4, kind: output, shape index: {}]
  %s5 = sld [smem:[#allocation0]]
  $region38: #{tpu_custom_call.1} parent=0
    _
  %s7 = ssub.s32 1, %s5
  %s8 = scalar_select 0, %s7, %s5
  $region1: #{tpu_custom_call.1} parent=0
    #allocation2 [shape = 'u8[24576]{0}', space=vmem, size = 0x6000, scoped, tag = 'input window, operand 0, single buffered']
    #allocation3 [shape = 's32[1]{0}', space=sflag, size = 0x4, scoped, tag = 'scoped memory for tpu_custom_call.1']
    #allocation4 [shape = 's32[1]{0}', space=sflag, size = 0x4, scoped, tag = 'scoped memory for tpu_custom_call.1']
    #allocation5 [shape = 'u8[16384]{0}', space=vmem, size = 0x4000, scoped, tag = 'input window, operand 1, single buffered']
    #allocation6 [shape = 's32[1]{0}', space=sflag, size = 0x4, scoped, tag = 'scoped memory for tpu_custom_call.1']
    #allocation7 [shape = 'u8[16384]{0}', space=vmem, size = 0x4000, scoped, tag = 'input window, operand 2, single buffered']
    #allocation8 [shape = 'u8[24576]{0}', space=vmem, size = 0x6000, scoped, tag = 'output window, operand 0, single buffered']
    %9 = vsyncpa [#allocation3], 0
    %10 = vsyncpa [#allocation6], 0
    %11 = vsyncpa [#allocation4], 0
    // Predicated region
    $region2: #{tpu_custom_call.1} parent=1 // pred_check
      _
    $region3: #{tpu_custom_call.1} parent=1 // pred_check_branch
      %13 = sbr.rel (0) target = $region5
    $region4: #{tpu_custom_call.1} parent=1 // pred_region
      %15 = vsyncadd [#allocation3], 0
      %s16 = sshll.u32 %s0, 4
      %s17 = int_to_ptr.hbm [resolvable:$true] %s16
      %s18 = sshll.u32 [#allocation2], 4
      %s19 = int_to_ptr.vmem [resolvable:$true] %s18
      %24 = dma.hbm_to_vmem [thread:$0]  %s17, 768, %s19, [#allocation3], 128, 128, 8
    $region5: #{tpu_custom_call.1} parent=1 // pred_fallthru
      _
    // Predicated region
    $region6: #{tpu_custom_call.1} parent=1 // pred_check
      _
    $region7: #{tpu_custom_call.1} parent=1 // pred_check_branch
      %26 = sbr.rel (0) target = $region9
    $region8: #{tpu_custom_call.1} parent=1 // pred_region
      %28 = vsyncadd [#allocation6], 0
      %s29 = sshll.u32 %s1, 4
      %s30 = int_to_ptr.hbm [resolvable:$true] %s29
      %s31 = sshll.u32 [#allocation5], 4
      %s32 = int_to_ptr.vmem [resolvable:$true] %s31
      %37 = dma.hbm_to_vmem [thread:$0]  %s30, 512, %s32, [#allocation6], 128, 128, 8
    $region9: #{tpu_custom_call.1} parent=1 // pred_fallthru
      _
    // Predicated region
    $region10: #{tpu_custom_call.1} parent=1 // pred_check
      _
    $region11: #{tpu_custom_call.1} parent=1 // pred_check_branch
      %39 = sbr.rel (0) target = $region13
    $region12: #{tpu_custom_call.1} parent=1 // pred_region
      %41 = vsyncadd [#allocation6], 0
      %s42 = sshll.u32 %s2, 4
      %s43 = int_to_ptr.hbm [resolvable:$true] %s42
      %s44 = sshll.u32 [#allocation7], 4
      %s45 = int_to_ptr.vmem [resolvable:$true] %s44
      %50 = dma.hbm_to_vmem [thread:$0]  %s43, 512, %s45, [#allocation6], 128, 128, 8
    $region13: #{tpu_custom_call.1} parent=1 // pred_fallthru
      _
    // Predicated region
    $region14: #{tpu_custom_call.1} parent=1 // pred_check
      _
    $region15: #{tpu_custom_call.1} parent=1 // pred_check_branch
      %52 = sbr.rel (0) target = $region17
    $region16: #{tpu_custom_call.1} parent=1 // pred_region
      _
    $region17: #{tpu_custom_call.1} parent=1 // pred_fallthru
      _
    // Predicated region
    $region18: #{tpu_custom_call.1} parent=1 // pred_check
      _
    $region19: #{tpu_custom_call.1} parent=1 // pred_check_branch
      %54 = sbr.rel (0) target = $region21
    $region20: #{tpu_custom_call.1} parent=1 // pred_region
      %56 = dma.done [#allocation3], 768
    $region21: #{tpu_custom_call.1} parent=1 // pred_fallthru
      _
    // Predicated region
    $region22: #{tpu_custom_call.1} parent=1 // pred_check
      _
    $region23: #{tpu_custom_call.1} parent=1 // pred_check_branch
      %58 = sbr.rel (0) target = $region25
    $region24: #{tpu_custom_call.1} parent=1 // pred_region
      %60 = dma.done [#allocation6], 512
    $region25: #{tpu_custom_call.1} parent=1 // pred_fallthru
      _
    // Predicated region
    $region26: #{tpu_custom_call.1} parent=1 // pred_check
      _
    $region27: #{tpu_custom_call.1} parent=1 // pred_check_branch
      %62 = sbr.rel (0) target = $region29
    $region28: #{tpu_custom_call.1} parent=1 // pred_region
      %64 = dma.done [#allocation6], 512
    $region29: #{tpu_custom_call.1} parent=1 // pred_fallthru
      _
    %v65 = vld [vmem:[#allocation5] sm:$0xff]
    %v66 = vld [vmem:[#allocation5 + $0x8] sm:$0xff]
    %v67 = vld [vmem:[#allocation5 + $0x10] sm:$0xff]
    %v68 = vld [vmem:[#allocation5 + $0x18] sm:$0xff]
    %v69 = vlaneseq
    %v70 = vand.u32 %v69, 127
    %vm71 = vcmp.ge.s32.totalorder %v70, 64
    %vm72 = vcmp.lt.s32.totalorder %v70, 96
    %vm73 = vmand %vm71, %vm72
    %v74 = vld [vmem:[#allocation2] sm:$0xff]
    %vm75 = vcmask 261120
    %v77 = vsel %vm75, 0.0, 0
    %79 = vmatpush.msra.mxu0 0.0
    %80 = vmatpush.msra.mxu0 0.0
    %81 = vmatpush.msra.mxu0 0.0
    %82 = vmatpush.msra.mxu0 0.0
    %83 = vmatpush.msra.mxu0 0.0
    %84 = vmatpush.msra.mxu0 0.0
    %85 = vmatpush.msra.mxu0 0.0
    %86 = vmatpush.msra.mxu0 0.0
    %87 = vmatpush.msra.mxu0 0.0
    %88 = vmatpush.msra.mxu0 0.0
    %89 = vmatpush.msra.mxu0 0.0
    %90 = vmatpush.msra.mxu0 0.0
    %91 = vmatpush.msra.mxu0 %v68
    %92 = vmatpush.msra.mxu0 %v67
    %93 = vmatpush.msra.mxu0 %v66
    %94 = vmatpush.msra.mxu0 %v65
    %95 = vmatmul.f32.gmra.mxu0 %v77
    %v96 = vpop.f32.mrf.mxu0
    %v97 = vadd.f32 0.0, %v96
    %98 = vdwg.mxu0
    %v99 = vadd.f32 %v74, %v97
    %v100 = vtanh.pop %v99
    %v101 = vxor.u32 %v99, 2147483648
    %v102 = vmul.f32 %v101, 1.442695
    %v103 = vpow.pop %v102
    %v104 = vadd.f32 %v103, 1.0
    %v105 = vrcp.pop %v104
    %v106 = vmul.f32 %v104, %v105
    %v107 = vsub.f32 1.0, %v106
    %v108 = vmul.f32 %v105, %v107
    %v109 = vadd.f32 %v105, %v108
    %vm110 = vweird.f32 %v104
    %vm111 = vweird.f32 %v105
    %vm112 = vmor %vm110, %vm111
    %v113 = vsel %vm112, %v105, %v109
    %v114 = vand.u32 2147483647, %v104
    %vm115 = vcmp.eq.f32.partialorder %v114, 8.507059e+37
    %v116 = vand.u32 %v104, 2147483648
    %v117 = vor.u32 1.1754944e-38, %v116
    %v118 = vsel %vm115, %v117, %v113
    %v119 = vmul.f32 1.0, %v118
    %v120 = vsel %vm73, %v100, %v119
    %v121 = vmul.f32 %v120, 0.0
    %123 = vrot.lane.b32.xlu0 %v120, 64
    %v124 = vpop.permute.xlu0 %123
    %v126 = vmul.f32 %v120, %v124
    %128 = vrot.lane.b32.xlu0 %v126, 32
    %v129 = vpop.permute.xlu0 %128
    %v131 = vadd.f32 %v121, %v129
    %v132 = vtanh.pop %v131
    %134 = vrot.lane.b32.xlu0 %v132, 64
    %v135 = vpop.permute.xlu0 %134
    %v137 = vmul.f32 %v120, %v135
    %s138 = scalar_lea.vmem [#allocation2], 8
    %v139 = vld [vmem:[%s138] sm:$0xff]
    %141 = vrot.lane.b32.xlu0 %v137, 32
    %v142 = vpop.permute.xlu0 %141
    %v143 = vsel %vm75, %v142, 0
    %145 = vmatpush.msra.mxu0 0.0
    %146 = vmatpush.msra.mxu0 0.0
    %147 = vmatpush.msra.mxu0 0.0
    %148 = vmatpush.msra.mxu0 0.0
    %149 = vmatpush.msra.mxu0 0.0
    %150 = vmatpush.msra.mxu0 0.0
    %151 = vmatpush.msra.mxu0 0.0
    %152 = vmatpush.msra.mxu0 0.0
    %153 = vmatpush.msra.mxu0 0.0
    %154 = vmatpush.msra.mxu0 0.0
    %155 = vmatpush.msra.mxu0 0.0
    %156 = vmatpush.msra.mxu0 0.0
    %157 = vmatpush.msra.mxu0 %v68
    %158 = vmatpush.msra.mxu0 %v67
    %159 = vmatpush.msra.mxu0 %v66
    %160 = vmatpush.msra.mxu0 %v65
    %161 = vmatmul.f32.gmra.mxu0 %v143
    %v162 = vpop.f32.mrf.mxu0
    %v163 = vadd.f32 0.0, %v162
    %164 = vdwg.mxu0
    %v165 = vadd.f32 %v139, %v163
    %v166 = vtanh.pop %v165
    %v167 = vxor.u32 %v165, 2147483648
    %v168 = vmul.f32 %v167, 1.442695
    %v169 = vpow.pop %v168
    %v170 = vadd.f32 %v169, 1.0
    %v171 = vrcp.pop %v170
    %v172 = vmul.f32 %v170, %v171
    %v173 = vsub.f32 1.0, %v172
    %v174 = vmul.f32 %v171, %v173
    %v175 = vadd.f32 %v171, %v174
    %vm176 = vweird.f32 %v170
    %vm177 = vweird.f32 %v171
    %vm178 = vmor %vm176, %vm177
    %v179 = vsel %vm178, %v171, %v175
    %v180 = vand.u32 2147483647, %v170
    %vm181 = vcmp.eq.f32.partialorder %v180, 8.507059e+37
    %v182 = vand.u32 %v170, 2147483648
    %v183 = vor.u32 1.1754944e-38, %v182
    %v184 = vsel %vm181, %v183, %v179
    %v185 = vmul.f32 1.0, %v184
    %v186 = vsel %vm73, %v166, %v185
    %v187 = vmul.f32 %v186, %v131
    %189 = vrot.lane.b32.xlu0 %v186, 64
    %v190 = vpop.permute.xlu0 %189
    %v192 = vmul.f32 %v186, %v190
    %194 = vrot.lane.b32.xlu0 %v192, 32
    %v195 = vpop.permute.xlu0 %194
    %v197 = vadd.f32 %v187, %v195
    %v198 = vtanh.pop %v197
    %200 = vrot.lane.b32.xlu0 %v198, 64
    %v201 = vpop.permute.xlu0 %200
    %v203 = vmul.f32 %v186, %v201
    %s204 = scalar_lea.vmem [#allocation2], 16
    %v205 = vld [vmem:[%s204] sm:$0xff]
    %207 = vrot.lane.b32.xlu0 %v203, 32
    %v208 = vpop.permute.xlu0 %207
    %v209 = vsel %vm75, %v208, 0
    %211 = vmatpush.msra.mxu0 0.0
    %212 = vmatpush.msra.mxu0 0.0
    %213 = vmatpush.msra.mxu0 0.0
    %214 = vmatpush.msra.mxu0 0.0
    %215 = vmatpush.msra.mxu0 0.0
    %216 = vmatpush.msra.mxu0 0.0
    %217 = vmatpush.msra.mxu0 0.0
    %218 = vmatpush.msra.mxu0 0.0
    %219 = vmatpush.msra.mxu0 0.0
    %220 = vmatpush.msra.mxu0 0.0
    %221 = vmatpush.msra.mxu0 0.0
    %222 = vmatpush.msra.mxu0 0.0
    %223 = vmatpush.msra.mxu0 %v68
    %224 = vmatpush.msra.mxu0 %v67
    %225 = vmatpush.msra.mxu0 %v66
    %226 = vmatpush.msra.mxu0 %v65
    %227 = vmatmul.f32.gmra.mxu0 %v209
    %v228 = vpop.f32.mrf.mxu0
    %v229 = vadd.f32 0.0, %v228
    %230 = vdwg.mxu0
    %v231 = vadd.f32 %v205, %v229
    %v232 = vtanh.pop %v231
    %v233 = vxor.u32 %v231, 2147483648
    %v234 = vmul.f32 %v233, 1.442695
    %v235 = vpow.pop %v234
    %v236 = vadd.f32 %v235, 1.0
    %v237 = vrcp.pop %v236
    %v238 = vmul.f32 %v236, %v237
    %v239 = vsub.f32 1.0, %v238
    %v240 = vmul.f32 %v237, %v239
    %v241 = vadd.f32 %v237, %v240
    %vm242 = vweird.f32 %v236
    %vm243 = vweird.f32 %v237
    %vm244 = vmor %vm242, %vm243
    %v245 = vsel %vm244, %v237, %v241
    %v246 = vand.u32 2147483647, %v236
    %vm247 = vcmp.eq.f32.partialorder %v246, 8.507059e+37
    %v248 = vand.u32 %v236, 2147483648
    %v249 = vor.u32 1.1754944e-38, %v248
    %v250 = vsel %vm247, %v249, %v245
    %v251 = vmul.f32 1.0, %v250
    %v252 = vsel %vm73, %v232, %v251
    %v253 = vmul.f32 %v252, %v197
    %255 = vrot.lane.b32.xlu0 %v252, 64
    %v256 = vpop.permute.xlu0 %255
    %v258 = vmul.f32 %v252, %v256
    %260 = vrot.lane.b32.xlu0 %v258, 32
    %v261 = vpop.permute.xlu0 %260
    %v263 = vadd.f32 %v253, %v261
    %v264 = vtanh.pop %v263
    %266 = vrot.lane.b32.xlu0 %v264, 64
    %v267 = vpop.permute.xlu0 %266
    %v269 = vmul.f32 %v252, %v267
    %s270 = scalar_lea.vmem [#allocation2], 24
    %v271 = vld [vmem:[%s270] sm:$0xff]
    %273 = vrot.lane.b32.xlu0 %v269, 32
    %v274 = vpop.permute.xlu0 %273
    %v275 = vsel %vm75, %v274, 0
    %277 = vmatpush.msra.mxu0 0.0
    %278 = vmatpush.msra.mxu0 0.0
    %279 = vmatpush.msra.mxu0 0.0
    %280 = vmatpush.msra.mxu0 0.0
    %281 = vmatpush.msra.mxu0 0.0
    %282 = vmatpush.msra.mxu0 0.0
    %283 = vmatpush.msra.mxu0 0.0
    %284 = vmatpush.msra.mxu0 0.0
    %285 = vmatpush.msra.mxu0 0.0
    %286 = vmatpush.msra.mxu0 0.0
    %287 = vmatpush.msra.mxu0 0.0
    %288 = vmatpush.msra.mxu0 0.0
    %289 = vmatpush.msra.mxu0 %v68
    %290 = vmatpush.msra.mxu0 %v67
    %291 = vmatpush.msra.mxu0 %v66
    %292 = vmatpush.msra.mxu0 %v65
    %293 = vmatmul.f32.gmra.mxu0 %v275
    %v294 = vpop.f32.mrf.mxu0
    %v295 = vadd.f32 0.0, %v294
    %296 = vdwg.mxu0
    %v297 = vadd.f32 %v271, %v295
    %v298 = vtanh.pop %v297
    %v299 = vxor.u32 %v297, 2147483648
    %v300 = vmul.f32 %v299, 1.442695
    %v301 = vpow.pop %v300
    %v302 = vadd.f32 %v301, 1.0
    %v303 = vrcp.pop %v302
    %v304 = vmul.f32 %v302, %v303
    %v305 = vsub.f32 1.0, %v304
    %v306 = vmul.f32 %v303, %v305
    %v307 = vadd.f32 %v303, %v306
    %vm308 = vweird.f32 %v302
    %vm309 = vweird.f32 %v303
    %vm310 = vmor %vm308, %vm309
    %v311 = vsel %vm310, %v303, %v307
    %v312 = vand.u32 2147483647, %v302
    %vm313 = vcmp.eq.f32.partialorder %v312, 8.507059e+37
    %v314 = vand.u32 %v302, 2147483648
    %v315 = vor.u32 1.1754944e-38, %v314
    %v316 = vsel %vm313, %v315, %v311
    %v317 = vmul.f32 1.0, %v316
    %v318 = vsel %vm73, %v298, %v317
    %v319 = vmul.f32 %v318, %v263
    %321 = vrot.lane.b32.xlu0 %v318, 64
    %v322 = vpop.permute.xlu0 %321
    %v324 = vmul.f32 %v318, %v322
    %326 = vrot.lane.b32.xlu0 %v324, 32
    %v327 = vpop.permute.xlu0 %326
    %v329 = vadd.f32 %v319, %v327
    %v330 = vtanh.pop %v329
    %332 = vrot.lane.b32.xlu0 %v330, 64
    %v333 = vpop.permute.xlu0 %332
    %v335 = vmul.f32 %v318, %v333
    %s336 = scalar_lea.vmem [#allocation2], 32
    %v337 = vld [vmem:[%s336] sm:$0xff]
    %339 = vrot.lane.b32.xlu0 %v335, 32
    %v340 = vpop.permute.xlu0 %339
    %v341 = vsel %vm75, %v340, 0
    %343 = vmatpush.msra.mxu0 0.0
    %344 = vmatpush.msra.mxu0 0.0
    %345 = vmatpush.msra.mxu0 0.0
    %346 = vmatpush.msra.mxu0 0.0
    %347 = vmatpush.msra.mxu0 0.0
    %348 = vmatpush.msra.mxu0 0.0
    %349 = vmatpush.msra.mxu0 0.0
    %350 = vmatpush.msra.mxu0 0.0
    %351 = vmatpush.msra.mxu0 0.0
    %352 = vmatpush.msra.mxu0 0.0
    %353 = vmatpush.msra.mxu0 0.0
    %354 = vmatpush.msra.mxu0 0.0
    %355 = vmatpush.msra.mxu0 %v68
    %356 = vmatpush.msra.mxu0 %v67
    %357 = vmatpush.msra.mxu0 %v66
    %358 = vmatpush.msra.mxu0 %v65
    %359 = vmatmul.f32.gmra.mxu0 %v341
    %v360 = vpop.f32.mrf.mxu0
    %v361 = vadd.f32 0.0, %v360
    %362 = vdwg.mxu0
    %v363 = vadd.f32 %v337, %v361
    %v364 = vtanh.pop %v363
    %v365 = vxor.u32 %v363, 2147483648
    %v366 = vmul.f32 %v365, 1.442695
    %v367 = vpow.pop %v366
    %v368 = vadd.f32 %v367, 1.0
    %v369 = vrcp.pop %v368
    %v370 = vmul.f32 %v368, %v369
    %v371 = vsub.f32 1.0, %v370
    %v372 = vmul.f32 %v369, %v371
    %v373 = vadd.f32 %v369, %v372
    %vm374 = vweird.f32 %v368
    %vm375 = vweird.f32 %v369
    %vm376 = vmor %vm374, %vm375
    %v377 = vsel %vm376, %v369, %v373
    %v378 = vand.u32 2147483647, %v368
    %vm379 = vcmp.eq.f32.partialorder %v378, 8.507059e+37
    %v380 = vand.u32 %v368, 2147483648
    %v381 = vor.u32 1.1754944e-38, %v380
    %v382 = vsel %vm379, %v381, %v377
    %v383 = vmul.f32 1.0, %v382
    %v384 = vsel %vm73, %v364, %v383
    %v385 = vmul.f32 %v384, %v329
    %387 = vrot.lane.b32.xlu0 %v384, 64
    %v388 = vpop.permute.xlu0 %387
    %v390 = vmul.f32 %v384, %v388
    %392 = vrot.lane.b32.xlu0 %v390, 32
    %v393 = vpop.permute.xlu0 %392
    %v395 = vadd.f32 %v385, %v393
    %v396 = vtanh.pop %v395
    %398 = vrot.lane.b32.xlu0 %v396, 64
    %v399 = vpop.permute.xlu0 %398
    %v401 = vmul.f32 %v384, %v399
    %s402 = scalar_lea.vmem [#allocation2], 40
    %v403 = vld [vmem:[%s402] sm:$0xff]
    %405 = vrot.lane.b32.xlu0 %v401, 32
    %v406 = vpop.permute.xlu0 %405
    %v407 = vsel %vm75, %v406, 0
    %409 = vmatpush.msra.mxu0 0.0
    %410 = vmatpush.msra.mxu0 0.0
    %411 = vmatpush.msra.mxu0 0.0
    %412 = vmatpush.msra.mxu0 0.0
    %413 = vmatpush.msra.mxu0 0.0
    %414 = vmatpush.msra.mxu0 0.0
    %415 = vmatpush.msra.mxu0 0.0
    %416 = vmatpush.msra.mxu0 0.0
    %417 = vmatpush.msra.mxu0 0.0
    %418 = vmatpush.msra.mxu0 0.0
    %419 = vmatpush.msra.mxu0 0.0
    %420 = vmatpush.msra.mxu0 0.0
    %421 = vmatpush.msra.mxu0 %v68
    %422 = vmatpush.msra.mxu0 %v67
    %423 = vmatpush.msra.mxu0 %v66
    %424 = vmatpush.msra.mxu0 %v65
    %425 = vmatmul.f32.gmra.mxu0 %v407
    %v426 = vpop.f32.mrf.mxu0
    %v427 = vadd.f32 0.0, %v426
    %428 = vdwg.mxu0
    %v429 = vadd.f32 %v403, %v427
    %v430 = vtanh.pop %v429
    %v431 = vxor.u32 %v429, 2147483648
    %v432 = vmul.f32 %v431, 1.442695
    %v433 = vpow.pop %v432
    %v434 = vadd.f32 %v433, 1.0
    %v435 = vrcp.pop %v434
    %v436 = vmul.f32 %v434, %v435
    %v437 = vsub.f32 1.0, %v436
    %v438 = vmul.f32 %v435, %v437
    %v439 = vadd.f32 %v435, %v438
    %vm440 = vweird.f32 %v434
    %vm441 = vweird.f32 %v435
    %vm442 = vmor %vm440, %vm441
    %v443 = vsel %vm442, %v435, %v439
    %v444 = vand.u32 2147483647, %v434
    %vm445 = vcmp.eq.f32.partialorder %v444, 8.507059e+37
    %v446 = vand.u32 %v434, 2147483648
    %v447 = vor.u32 1.1754944e-38, %v446
    %v448 = vsel %vm445, %v447, %v443
    %v449 = vmul.f32 1.0, %v448
    %v450 = vsel %vm73, %v430, %v449
    %v451 = vmul.f32 %v450, %v395
    %453 = vrot.lane.b32.xlu0 %v450, 64
    %v454 = vpop.permute.xlu0 %453
    %v456 = vmul.f32 %v450, %v454
    %458 = vrot.lane.b32.xlu0 %v456, 32
    %v459 = vpop.permute.xlu0 %458
    %v461 = vadd.f32 %v451, %v459
    %v462 = vtanh.pop %v461
    %464 = vrot.lane.b32.xlu0 %v462, 64
    %v465 = vpop.permute.xlu0 %464
    %v467 = vmul.f32 %v450, %v465
    %v468 = vld [vmem:[#allocation7] sm:$0xff]
    %v469 = vld [vmem:[#allocation7 + $0x8] sm:$0xff]
    %v470 = vld [vmem:[#allocation7 + $0x10] sm:$0xff]
    %v471 = vld [vmem:[#allocation7 + $0x18] sm:$0xff]
    %v472 = vld [vmem:[%s3] sm:$0x1]
    %v474 = vperm.slane %v472, 0
    %477 = vrot.lane.b32.xlu0 %v467, 32
    %v478 = vpop.permute.xlu0 %477
    %v479 = vsel %vm75, %v478, 0
    %481 = vmatpush.msra.mxu0 0.0
    %482 = vmatpush.msra.mxu0 0.0
    %483 = vmatpush.msra.mxu0 0.0
    %484 = vmatpush.msra.mxu0 0.0
    %485 = vmatpush.msra.mxu0 0.0
    %486 = vmatpush.msra.mxu0 0.0
    %487 = vmatpush.msra.mxu0 0.0
    %488 = vmatpush.msra.mxu0 0.0
    %489 = vmatpush.msra.mxu0 0.0
    %490 = vmatpush.msra.mxu0 0.0
    %491 = vmatpush.msra.mxu0 0.0
    %492 = vmatpush.msra.mxu0 0.0
    %493 = vmatpush.msra.mxu0 %v471
    %494 = vmatpush.msra.mxu0 %v470
    %495 = vmatpush.msra.mxu0 %v469
    %496 = vmatpush.msra.mxu0 %v468
    %497 = vmatmul.f32.gmra.mxu0 %v143
    %v498 = vpop.f32.mrf.mxu0
    %v499 = vadd.f32 %v474, %v498
    %500 = vmatmul.f32.gmra.mxu0 %v209
    %v501 = vpop.f32.mrf.mxu0
    %v502 = vadd.f32 %v474, %v501
    %503 = vmatmul.f32.gmra.mxu0 %v275
    %v504 = vpop.f32.mrf.mxu0
    %v505 = vadd.f32 %v474, %v504
    %506 = vmatmul.f32.gmra.mxu0 %v341
    %v507 = vpop.f32.mrf.mxu0
    %v508 = vadd.f32 %v474, %v507
    %509 = vmatmul.f32.gmra.mxu0 %v407
    %v510 = vpop.f32.mrf.mxu0
    %v511 = vadd.f32 %v474, %v510
    %512 = vmatmul.f32.gmra.mxu0 %v479
    %v513 = vpop.f32.mrf.mxu0
    %v514 = vadd.f32 %v474, %v513
    %515 = vdwg.mxu0
    %516 = vst [vmem:[#allocation8] sm:$0xff] %v499
    %517 = vst [vmem:[#allocation8 + $0x8] sm:$0xff] %v502
    %518 = vst [vmem:[#allocation8 + $0x10] sm:$0xff] %v505
    %519 = vst [vmem:[#allocation8 + $0x18] sm:$0xff] %v508
    %520 = vst [vmem:[#allocation8 + $0x20] sm:$0xff] %v511
    %521 = vst [vmem:[#allocation8 + $0x28] sm:$0xff] %v514
    // Predicated region
    $region30: #{tpu_custom_call.1} parent=1 // pred_check
      _
    $region31: #{tpu_custom_call.1} parent=1 // pred_check_branch
      %523 = sbr.rel (0) target = $region33
    $region32: #{tpu_custom_call.1} parent=1 // pred_region
      %525 = vsyncadd [#allocation4], 0
      %s526 = sshll.u32 [#allocation8], 4
      %s527 = int_to_ptr.vmem [resolvable:$true] %s526
      %s528 = sshll.u32 %s4, 4
      %s529 = int_to_ptr.hbm [resolvable:$true] %s528
      %534 = dma.vmem_to_hbm [thread:$0]  %s527, 768, %s529, [#allocation4], 128, 128, 8
    $region33: #{tpu_custom_call.1} parent=1 // pred_fallthru
      _
    // Predicated region
    $region34: #{tpu_custom_call.1} parent=1 // pred_check
      _
    $region35: #{tpu_custom_call.1} parent=1 // pred_check_branch
      %536 = sbr.rel (0) target = $region37
    $region36: #{tpu_custom_call.1} parent=1 // pred_region
      %538 = dma.done [#allocation4], 768
    $region37: #{tpu_custom_call.1} parent=1 // pred_fallthru
      _
    %539 = vsyncpa [#allocation3], 1
    %540 = vsyncpa [#allocation6], 1
    %541 = vsyncpa [#allocation4], 1

</llo_original>
